<compile_context>
chip_gen: v6e
topology: v6e:2x2x1
jax: 0.10.0
libtpu: 0.0.40
codegen_flags: <defaults>
</compile_context>

<pallas_src>
import jax
import jax.numpy as jnp
from jax.experimental import pallas as pl
from jax.experimental.pallas import tpu as pltpu


# ---------------------------------------------------------------------------
# Generation-aware VMEM budgeting
# ---------------------------------------------------------------------------

def _query_vmem_capacity_bytes():
    try:
        return int(pltpu.get_tpu_info().vmem_capacity_bytes)
    except Exception:
        # Conservative fallback: v7x per-TensorCore VMEM (safe everywhere).
        return 64 * 1024 * 1024


_VMEM_CAP = _query_vmem_capacity_bytes()
# Scoped limit we request from the compiler (~96 MiB on 128 MiB chips,
# ~48 MiB on v7x's 64 MiB per-core VMEM).
_VMEM_LIMIT = max(min((_VMEM_CAP * 3) // 4, _VMEM_CAP - (8 << 20)), 16 << 20)
# Budget for our own working set (leave headroom for compiler scratch).
_TILE_BUDGET = max(_VMEM_LIMIT - (4 << 20), 8 << 20)
# Small per-core VMEM is the v7x signature (2 TensorCores per chip).
_IS_SMALL_VMEM = _VMEM_CAP < (100 << 20)


def _probe_pipeline_mode():
    try:
        pl.BlockSpec((8, 128), lambda i: (0, 0), pipeline_mode=pl.Buffered(1))
        return True
    except Exception:
        return False


_HAS_PIPELINE_MODE = _probe_pipeline_mode()


def _grid_invariant_spec(block_shape, index_map):
    """Single-buffer blocks whose data does not change across the hot grid axis."""
    if _HAS_PIPELINE_MODE:
        return pl.BlockSpec(block_shape, index_map, pipeline_mode=pl.Buffered(1))
    return pl.BlockSpec(block_shape, index_map)


# ---------------------------------------------------------------------------
# Kernels
# ---------------------------------------------------------------------------

def _make_fused_kernel(inv_hw):
    """Single-pass kernel. Blocks: x1/x2/o -> (1, C, HWp); w1t/w2 -> (C, C)."""

    def kernel(x1_ref, x2_ref, w1t_ref, w2_ref, o_ref):
        x1 = x1_ref[0].astype(jnp.float32)                     # (C, HWp)
        x2 = x2_ref[0].astype(jnp.float32)

        # GAP via linearity: mean(x1+x2) = mean(x1) + mean(x2); no (C, HW)
        # sum temporary is kept live across the lane reduction. Zero-padded
        # lanes contribute 0; inv_hw carries the true-HW denominator.
        gap = (jnp.sum(x1, axis=-1, keepdims=True)
               + jnp.sum(x2, axis=-1, keepdims=True)) * inv_hw  # (C, 1)

        # Tiny attention MLP on the VPU/XLU; keeps the MXU off the per-batch
        # critical path.  w1t = w1.T with shape (C_in, C_out).
        h = jnp.sum(w1t_ref[...] * gap, axis=0, keepdims=True)  # (1, C)
        h = jnp.maximum(h, 0.0)
        a = jnp.sum(w2_ref[...] * h, axis=1, keepdims=True)     # (C, 1)
        a = jax.nn.sigmoid(a)

        # out = x + a * x == x * (1 + a); the sum is only formed inside the
        # streamed store expression.
        o_ref[0] = ((x1 + x2) * (1.0 + a)).astype(o_ref.dtype)

    return kernel


def _gap_sum_kernel(x1_ref, x2_ref, s_ref):
    """Accumulate per-channel spatial sums of (x1 + x2) across spatial tiles.

    Blocks: x1/x2 -> (1, C, t_hw); s -> (1, 1, C, 1) (one partial per (b, p)).
    Grid: (B, P, n_t); the last axis is the reduction axis.
    """
    @pl.when(pl.program_id(2) == 0)
    def _():
        s_ref[...] = jnp.zeros_like(s_ref)

    s_ref[0, 0] += (
        jnp.sum(x1_ref[0].astype(jnp.float32), axis=-1, keepdims=True)
        + jnp.sum(x2_ref[0].astype(jnp.float32), axis=-1, keepdims=True))


def _apply_kernel(x1_ref, x2_ref, scale_ref, o_ref):
    """Purely elementwise apply: out = (x1 + x2) * (1 + a)."""
    xs = x1_ref[0].astype(jnp.float32) + x2_ref[0].astype(jnp.float32)
    o_ref[0] = (xs * scale_ref[0]).astype(o_ref.dtype)


# ---------------------------------------------------------------------------
# Wrapper
# ---------------------------------------------------------------------------

def _pick_spatial_tile(hw, bytes_per_col, budget, tile_hw=None):
    """Largest lane-dense spatial tile (multiple of 128 dividing hw) in budget."""
    if tile_hw is not None and hw % tile_hw == 0 and tile_hw % 128 == 0:
        return tile_hw
    best = min(hw, 128)
    t = 128
    while t <= hw:
        if hw % t == 0 and bytes_per_col * t <= budget:
            best = t
        t += 128
    return best


def channel_attention(x1_nchw, x2_nchw, w1, w2, *,
                      force_two_pass=False, tile_hw=None):
    """x1, x2: (B, C, H, W) f32/bf16. w1, w2: (C_out, C_in) 1x1-conv weights."""
    B, C, H, W = x1_nchw.shape
    HW = H * W
    dtype = x1_nchw.dtype
    itemsize = jnp.dtype(dtype).itemsize

    # Free views of NCHW: channels on sublanes, spatial on lanes.
    x1 = x1_nchw.reshape(B, C, HW)
    x2 = x2_nchw.reshape(B, C, HW)

    # Pad spatial dim to a lane multiple so all tiles are full-width unmasked
    # stores and VMEM stays bounded. Zero padding does not perturb the GAP
    # sums; the mean below uses the true HW denominator.
    HWp = ((HW + 127) // 128) * 128
    if HWp != HW:
        x1 = jnp.pad(x1, ((0, 0), (0, 0), (0, HWp - HW)))
        x2 = jnp.pad(x2, ((0, 0), (0, 0), (0, HWp - HW)))
    inv_hw = 1.0 / HW

    w1_f32 = w1.astype(jnp.float32)
    w2_f32 = w2.astype(jnp.float32)

    # Fused working-set accounting: x1/x2/out double-buffered, f32 compute
    # temporaries, and the two (C, C) weight blocks (single- or double-
    # buffered depending on pipeline_mode support).
    w_bufs = 1 if _HAS_PIPELINE_MODE else 2
    f32_temps = (2 if itemsize < 4 else 1) * C * HWp * 4
    fused_bytes = (6 * C * HWp * itemsize
                   + f32_temps
                   + 2 * w_bufs * C * C * 4)

    # At B==1 on v7x-like parts the fused grid has a single step: no DMA/
    # compute pipelining and only one of the two TensorCores gets fed.
    small_batch_penalty = _IS_SMALL_VMEM and B == 1

    if (not force_two_pass and not small_batch_penalty
            and fused_bytes <= _TILE_BUDGET):
        # ------------------------------------------------------------------
        # Single-pass fused kernel: 2 reads + 1 write per element (3N traffic).
        # ------------------------------------------------------------------
        out = pl.pallas_call(
            _make_fused_kernel(inv_hw),
            out_shape=jax.ShapeDtypeStruct((B, C, HWp), dtype),
            grid_spec=pltpu.PrefetchScalarGridSpec(
                num_scalar_prefetch=0,
                grid=(B,),
                in_specs=[
                    pl.BlockSpec((1, C, HWp), lambda b: (b, 0, 0)),
                    pl.BlockSpec((1, C, HWp), lambda b: (b, 0, 0)),
                    _grid_invariant_spec((C, C), lambda b: (0, 0)),
                    _grid_invariant_spec((C, C), lambda b: (0, 0)),
                ],
                out_specs=pl.BlockSpec((1, C, HWp), lambda b: (b, 0, 0)),
            ),
            compiler_params=pltpu.CompilerParams(
                dimension_semantics=("parallel",),
                vmem_limit_bytes=_VMEM_LIMIT),
        )(x1, x2, jnp.transpose(w1_f32), w2_f32)
        return out[:, :, :HW].reshape(B, C, H, W)

    # ----------------------------------------------------------------------
    # Two-pass tiled path (bounded VMEM at any size).
    # ----------------------------------------------------------------------

    # Pass 1: tiled per-channel spatial sum of (x1 + x2).  Only two double-
    # buffered input tiles live at once, so its tile is sized independently
    # (larger) of pass 2's.
    t1 = _pick_spatial_tile(HWp, 4 * C * itemsize + 2 * C * 4,
                            _TILE_BUDGET, tile_hw)
    n_t1 = HWp // t1
    # Split the reduction into P parallel partial sums so both v7x
    # TensorCores are busy even at B == 1 (negligible cost elsewhere).
    P = 2 if (n_t1 >= 2 and n_t1 % 2 == 0) else 1
    n_t1p = n_t1 // P

    gap_partial = pl.pallas_call(
        _gap_sum_kernel,
        out_shape=jax.ShapeDtypeStruct((B, P, C, 1), jnp.float32),
        grid_spec=pltpu.PrefetchScalarGridSpec(
            num_scalar_prefetch=0,
            grid=(B, P, n_t1p),
            in_specs=[
                pl.BlockSpec((1, C, t1), lambda b, p, t: (b, 0, p * n_t1p + t)),
                pl.BlockSpec((1, C, t1), lambda b, p, t: (b, 0, p * n_t1p + t)),
            ],
            out_specs=pl.BlockSpec((1, 1, C, 1), lambda b, p, t: (b, p, 0, 0)),
        ),
        compiler_params=pltpu.CompilerParams(
            dimension_semantics=("parallel", "parallel", "arbitrary"),
            vmem_limit_bytes=_VMEM_LIMIT),
    )(x1, x2)

    # Attention MLP hoisted out of the hot kernels: one batched (B,C)@(C,C).
    gap = jnp.sum(gap_partial[:, :, :, 0], axis=1) * inv_hw    # true-HW mean
    h = jnp.maximum(gap @ w1_f32.T, 0.0)
    a = jax.nn.sigmoid(h @ w2_f32.T)                           # (B, C)
    scale = (1.0 + a)[:, :, None]                              # (B, C, 1) f32

    # Pass 2: purely elementwise apply, both grid axes parallel.
    t2 = _pick_spatial_tile(HWp, 6 * C * itemsize + 2 * C * 4,
                            _TILE_BUDGET, tile_hw)
    n_t2 = HWp // t2

    out = pl.pallas_call(
        _apply_kernel,
        out_shape=jax.ShapeDtypeStruct((B, C, HWp), dtype),
        grid_spec=pltpu.PrefetchScalarGridSpec(
            num_scalar_prefetch=0,
            grid=(B, n_t2),
            in_specs=[
                pl.BlockSpec((1, C, t2), lambda b, t: (b, 0, t)),
                pl.BlockSpec((1, C, t2), lambda b, t: (b, 0, t)),
                _grid_invariant_spec((1, C, 1), lambda b, t: (b, 0, 0)),
            ],
            out_specs=pl.BlockSpec((1, C, t2), lambda b, t: (b, 0, t)),
        ),
        compiler_params=pltpu.CompilerParams(
            dimension_semantics=("parallel", "parallel"),
            vmem_limit_bytes=_VMEM_LIMIT),
    )(x1, x2, scale)
    return out[:, :, :HW].reshape(B, C, H, W)


# ---------------------------------------------------------------------------
# Pure-JAX reference of the (sanitized) forward pass, NCHW.
# ---------------------------------------------------------------------------

def _reference(x1, x2, w1, w2):
    x = x1 + x2
    gap = jnp.mean(x, axis=(2, 3))                       # (B, C)
    h = jnp.maximum(jnp.einsum("oc,bc->bo", w1, gap), 0.0)
    a = jax.nn.sigmoid(jnp.einsum("oc,bc->bo", w2, h))   # (B, C)
    return x + a[:, :, None, None] * x


if __name__ == "__main__":
    B, C, H, W = 2, 4, 16, 16   # inchannels == outchannels == 4

    key = jax.random.PRNGKey(0)
    k1, k2, k3, k4 = jax.random.split(key, 4)
    x1 = jax.random.normal(k1, (B, C, H, W), dtype=jnp.float32)
    x2 = jax.random.normal(k2, (B, C, H, W), dtype=jnp.float32)
    # 1x1-conv weights, shape (out_channels, in_channels)
    w1 = jax.random.normal(k3, (C, C), dtype=jnp.float32) * 0.5
    w2 = jax.random.normal(k4, (C, C), dtype=jnp.float32) * 0.5

    ref = _reference(x1, x2, w1, w2)

    # Fused single-pass path (used for small inputs like this demo).
    out_fused = channel_attention(x1, x2, w1, w2)
    jax.block_until_ready(out_fused)
    assert out_fused.shape == (B, C, H, W)
    assert jnp.allclose(out_fused, ref, atol=1e-5, rtol=1e-5)

    # Two-pass tiled path (the large-input code path), forced here to verify
    # (also exercises the P=2 parallel partial-sum reduction).
    out_tiled = channel_attention(x1, x2, w1, w2,
                                  force_two_pass=True, tile_hw=128)
    jax.block_until_ready(out_tiled)
    assert jnp.allclose(out_tiled, ref, atol=1e-5, rtol=1e-5)

    # Non-128-multiple spatial extent exercises the lane-padding path.
    x1o, x2o = x1[:, :, :, :15], x2[:, :, :, :15]        # HW = 240
    out_odd = channel_attention(x1o, x2o, w1, w2)
    jax.block_until_ready(out_odd)
    assert jnp.allclose(out_odd, _reference(x1o, x2o, w1, w2),
                        atol=1e-5, rtol=1e-5)

    # bf16 I/O variant (math in f32 inside the kernel).
    x1b, x2b = x1.astype(jnp.bfloat16), x2.astype(jnp.bfloat16)
    ref_bf = _reference(x1b.astype(jnp.float32), x2b.astype(jnp.float32), w1, w2)
    out_bf = channel_attention(x1b, x2b, w1, w2)
    jax.block_until_ready(out_bf)
    assert out_bf.dtype == jnp.bfloat16
    assert jnp.allclose(out_bf.astype(jnp.float32), ref_bf,
                        atol=5e-2, rtol=5e-2)

    print("KERNEL_OK")
</pallas_src>

<mosaic_0001>
module attributes {stable_mosaic.version = 11 : i64} {
  func.func @kernel(%arg0: i32, %arg1: memref<1x4x256xf32, #tpu.memory_space<vmem>>, %arg2: memref<1x4x256xf32, #tpu.memory_space<vmem>>, %arg3: memref<4x4xf32, #tpu.memory_space<vmem>>, %arg4: memref<4x4xf32, #tpu.memory_space<vmem>>, %arg5: memref<1x4x256xf32, #tpu.memory_space<vmem>>) attributes {dimension_semantics = [#tpu.dimension_semantics<parallel>], iteration_bounds = array<i64: 2>, scalar_prefetch = 0 : i64, scratch_operands = 0 : i64, tpu.core_type = #tpu.core_type<tc>, window_params = [{transform_indices = @transform_0, window_bounds = array<i64: 1, 4, 256>}, {transform_indices = @transform_1, window_bounds = array<i64: 1, 4, 256>}, {pipeline_mode = #tpu.pipeline_mode<synchronous>, transform_indices = @transform_2, window_bounds = array<i64: 4, 4>}, {pipeline_mode = #tpu.pipeline_mode<synchronous>, transform_indices = @transform_3, window_bounds = array<i64: 4, 4>}, {transform_indices = @transform_4, window_bounds = array<i64: 1, 4, 256>}]} {
    %c0 = arith.constant 0 : index
    %c0_0 = arith.constant 0 : index
    %c0_1 = arith.constant 0 : index
    %0 = vector.load %arg1[%c0, %c0_0, %c0_1] : memref<1x4x256xf32, #tpu.memory_space<vmem>>, vector<1x4x256xf32>
    %1 = vector.shape_cast %0 : vector<1x4x256xf32> to vector<4x256xf32>
    %c0_2 = arith.constant 0 : index
    %c0_3 = arith.constant 0 : index
    %c0_4 = arith.constant 0 : index
    %2 = vector.load %arg2[%c0_2, %c0_3, %c0_4] : memref<1x4x256xf32, #tpu.memory_space<vmem>>, vector<1x4x256xf32>
    %3 = vector.shape_cast %2 : vector<1x4x256xf32> to vector<4x256xf32>
    %cst = arith.constant dense<0.000000e+00> : vector<4xf32>
    %4 = vector.multi_reduction <add>, %1, %cst [1] : vector<4x256xf32> to vector<4xf32>
    %5 = vector.shape_cast %4 : vector<4xf32> to vector<4x1xf32>
    %cst_5 = arith.constant dense<0.000000e+00> : vector<4xf32>
    %6 = vector.multi_reduction <add>, %3, %cst_5 [1] : vector<4x256xf32> to vector<4xf32>
    %7 = vector.shape_cast %6 : vector<4xf32> to vector<4x1xf32>
    %8 = arith.addf %5, %7 : vector<4x1xf32>
    %cst_6 = arith.constant 3.906250e-03 : f32
    %9 = vector.broadcast %cst_6 : f32 to vector<4x1xf32>
    %10 = arith.mulf %8, %9 : vector<4x1xf32>
    %c0_7 = arith.constant 0 : index
    %c0_8 = arith.constant 0 : index
    %11 = vector.load %arg3[%c0_7, %c0_8] : memref<4x4xf32, #tpu.memory_space<vmem>>, vector<4x4xf32>
    %12 = vector.broadcast %10 : vector<4x1xf32> to vector<4x4xf32>
    %13 = arith.mulf %11, %12 : vector<4x4xf32>
    %cst_9 = arith.constant dense<0.000000e+00> : vector<4xf32>
    %14 = vector.multi_reduction <add>, %13, %cst_9 [0] : vector<4x4xf32> to vector<4xf32>
    %15 = vector.shape_cast %14 : vector<4xf32> to vector<1x4xf32>
    %cst_10 = arith.constant 0.000000e+00 : f32
    %16 = vector.broadcast %cst_10 : f32 to vector<1x4xf32>
    %17 = arith.maximumf %15, %16 : vector<1x4xf32>
    %c0_11 = arith.constant 0 : index
    %c0_12 = arith.constant 0 : index
    %18 = vector.load %arg4[%c0_11, %c0_12] : memref<4x4xf32, #tpu.memory_space<vmem>>, vector<4x4xf32>
    %19 = vector.broadcast %17 : vector<1x4xf32> to vector<4x4xf32>
    %20 = arith.mulf %18, %19 : vector<4x4xf32>
    %cst_13 = arith.constant dense<0.000000e+00> : vector<4xf32>
    %21 = vector.multi_reduction <add>, %20, %cst_13 [1] : vector<4x4xf32> to vector<4xf32>
    %22 = vector.shape_cast %21 : vector<4xf32> to vector<4x1xf32>
    %23 = arith.negf %22 : vector<4x1xf32>
    %24 = math.exp %23 : vector<4x1xf32>
    %cst_14 = arith.constant 1.000000e+00 : f32
    %25 = vector.broadcast %cst_14 : f32 to vector<4x1xf32>
    %26 = arith.addf %25, %24 : vector<4x1xf32>
    %27 = arith.divf %25, %26 : vector<4x1xf32>
    %28 = arith.addf %1, %3 : vector<4x256xf32>
    %cst_15 = arith.constant 1.000000e+00 : f32
    %29 = vector.broadcast %cst_15 : f32 to vector<4x1xf32>
    %30 = arith.addf %29, %27 : vector<4x1xf32>
    %31 = vector.broadcast %30 : vector<4x1xf32> to vector<4x256xf32>
    %32 = arith.mulf %28, %31 : vector<4x256xf32>
    %c0_16 = arith.constant 0 : index
    %c0_17 = arith.constant 0 : index
    %c0_18 = arith.constant 0 : index
    %33 = vector.load %arg5[%c0_16, %c0_17, %c0_18] : memref<1x4x256xf32, #tpu.memory_space<vmem>>, vector<1x4x256xf32>
    %34 = vector.shape_cast %33 : vector<1x4x256xf32> to vector<4x256xf32>
    %35 = vector.shape_cast %32 : vector<4x256xf32> to vector<1x4x256xf32>
    tpu.vector_store %arg5[%c0_16, %c0_17, %c0_18], %35 {strides = array<i32>} : memref<1x4x256xf32, #tpu.memory_space<vmem>>, vector<1x4x256xf32>,
    return
  }
  func.func @transform_0(%arg0: i32) -> (i32, i32, i32) {
    %c0_i32 = arith.constant 0 : i32
    %c0_i32_0 = arith.constant 0 : i32
    %c0_i32_1 = arith.constant 0 : i32
    return %arg0, %c0_i32, %c0_i32_0 : i32, i32, i32
  }
  func.func @transform_1(%arg0: i32) -> (i32, i32, i32) {
    %c0_i32 = arith.constant 0 : i32
    %c0_i32_0 = arith.constant 0 : i32
    %c0_i32_1 = arith.constant 0 : i32
    return %arg0, %c0_i32, %c0_i32_0 : i32, i32, i32
  }
  func.func @transform_2(%arg0: i32) -> (i32, i32) {
    %c0_i32 = arith.constant 0 : i32
    %c0_i32_0 = arith.constant 0 : i32
    %c0_i32_1 = arith.constant 0 : i32
    return %c0_i32, %c0_i32_0 : i32, i32
  }
  func.func @transform_3(%arg0: i32) -> (i32, i32) {
    %c0_i32 = arith.constant 0 : i32
    %c0_i32_0 = arith.constant 0 : i32
    %c0_i32_1 = arith.constant 0 : i32
    return %c0_i32, %c0_i32_0 : i32, i32
  }
  func.func @transform_4(%arg0: i32) -> (i32, i32, i32) {
    %c0_i32 = arith.constant 0 : i32
    %c0_i32_0 = arith.constant 0 : i32
    %c0_i32_1 = arith.constant 0 : i32
    return %arg0, %c0_i32, %c0_i32_0 : i32, i32, i32
  }
}

</mosaic_0001>

<llo_original>
// kernel: tpu_custom_call.1
$region0: #{tpu_custom_call.1}
  #allocation0 [shape = 'u32[]', space=smem, size = 0x4, offset = 0x4, fixed_abs, tag = 'smem constant byte address 0x4 - core index']
  #allocation1 [shape = 'u32[144,128]{1,0:T(1,128)}', space=vmem, size = 0x12000, scoped, tag = 'internal scratch']
  %s0 = inlined_call_operand.hbm [shape: f32[2,4,256], index: 0, kind: input, shape index: {}]
  %s1 = inlined_call_operand.hbm [shape: f32[2,4,256], index: 1, kind: input, shape index: {}]
  %s2 = inlined_call_operand.hbm [shape: f32[4,4], index: 2, kind: input, shape index: {}]
  %s3 = inlined_call_operand.vmem [shape: f32[4,4], index: 3, kind: input, shape index: {}]
  %s4 = inlined_call_operand.hbm [shape: f32[2,4,256], index: 4, kind: output, shape index: {}]
  %s5 = sld [smem:[#allocation0]]
  $region61: #{tpu_custom_call.1} parent=0
    _
  %s7 = ssub.s32 1, %s5
  %s8 = scalar_select 0, %s7, %s5
  $region1: #{tpu_custom_call.1} parent=0
    #allocation2 [shape = 'u8[8192]{0}', space=vmem, size = 0x2000, scoped, tag = 'input window, operand 0']
    #allocation3 [shape = 's32[2]{0}', space=sflag, size = 0x8, scoped, tag = 'scoped memory for tpu_custom_call.1']
    #allocation4 [shape = 's32[2]{0}', space=sflag, size = 0x8, scoped, tag = 'scoped memory for tpu_custom_call.1']
    #allocation5 [shape = 'u8[8192]{0}', space=vmem, size = 0x2000, scoped, tag = 'input window, operand 1']
    #allocation6 [shape = 's32[2]{0}', space=sflag, size = 0x8, scoped, tag = 'scoped memory for tpu_custom_call.1']
    #allocation7 [shape = 'u8[2048]{0}', space=vmem, size = 0x800, scoped, tag = 'input window, operand 2, single buffered']
    #allocation8 [shape = 'u8[8192]{0}', space=vmem, size = 0x2000, scoped, tag = 'output window, operand 0']
    %9 = vsyncpa [#allocation3], 0
    %s10 = scalar_lea.sflag [#allocation3], 1
    %11 = vsyncpa %s10, 0
    %12 = vsyncpa [#allocation6], 0
    %s13 = scalar_lea.sflag [#allocation6], 1
    %14 = vsyncpa %s13, 0
    %15 = vsyncpa [#allocation4], 0
    %s16 = scalar_lea.sflag [#allocation4], 1
    %17 = vsyncpa %s16, 0
    loop: start=0, step=1, limit=4
    $region2: #{tpu_custom_call.1} parent=1 // loop_pre_header
      _
    $region3: #{tpu_custom_call.1} parent=1 // loop_header
      %s19 = sphi 0, %s23
      %p20 = scmp.ge.s32.totalorder %s19, 4
      %s29 = sphi 0, %s31
      %s32 = sphi 0, %s29
      %s33 = sphi 0, %s32
      %s49 = sphi 0, %s33
      %s55 = sphi 0, %s57
      %s58 = sphi 0, %s55
      %s59 = sphi 0, %s58
      %s75 = sphi 0, %s59
      %s79 = sphi 0, %s79
      %s81 = sphi 0, %s79
      %s82 = sphi 0, %s81
      %s96 = sphi 0, %s82
      %s100 = sphi 0, %s100
      %s102 = sphi 0, %s100
      %s103 = sphi 0, %s102
      %s117 = sphi 0, %s103
      %s123 = sphi 0, %s125
      %s126 = sphi 0, %s123
      %s127 = sphi 0, %s126
      %s143 = sphi 0, %s127
    $region4: #{tpu_custom_call.1} parent=1 // loop_header_branch
      %22 = sbr.rel (%p20) target = $region8
    $region5: #{tpu_custom_call.1} parent=1 // loop_body
      %s24 = ssub.s32 %s19, 1
      %s25 = ssub.s32 %s19, 2
      %s26 = sadd.s32 %s19, 1
      %s27 = ssub.s32 %s19, %s26
      %p28 = scmp.eq.s32.totalorder %s27, 0
      %s30 = sadd.s32 %s29, 1
      %s31 = scalar_select %p28, %s29, %s30
      %p34 = pneg %p28
      %p35 = scmp.eq.s32.totalorder %s19, 1
      %p36 = por %p34, %p35
      %p37 = scmp.ne.s32.totalorder %s29, %s32
      %p38 = scmp.eq.s32.totalorder %s19, 0
      %p39 = por %p37, %p38
      %p40 = scmp.ne.s32.totalorder %s29, %s32
      %p41 = scmp.eq.s32.totalorder %s24, 1
      %p42 = por %p40, %p41
      %p43 = scmp.ne.s32.totalorder %s32, %s33
      %p44 = scmp.eq.s32.totalorder %s24, 0
      %p45 = por %p43, %p44
      %p46 = scmp.ne.s32.totalorder %s32, %s33
      %p47 = scmp.eq.s32.totalorder %s25, 1
      %p48 = por %p46, %p47
      %p50 = scmp.ne.s32.totalorder %s33, %s49
      %p51 = scmp.eq.s32.totalorder %s25, 0
      %p52 = por %p50, %p51
      %s53 = ssub.s32 %s19, %s26
      %p54 = scmp.eq.s32.totalorder %s53, 0
      %s56 = sadd.s32 %s55, 1
      %s57 = scalar_select %p54, %s55, %s56
      %p60 = pneg %p54
      %p61 = scmp.eq.s32.totalorder %s19, 1
      %p62 = por %p60, %p61
      %p63 = scmp.ne.s32.totalorder %s55, %s58
      %p64 = scmp.eq.s32.totalorder %s19, 0
      %p65 = por %p63, %p64
      %p66 = scmp.ne.s32.totalorder %s55, %s58
      %p67 = scmp.eq.s32.totalorder %s24, 1
      %p68 = por %p66, %p67
      %p69 = scmp.ne.s32.totalorder %s58, %s59
      %p70 = scmp.eq.s32.totalorder %s24, 0
      %p71 = por %p69, %p70
      %p72 = scmp.ne.s32.totalorder %s58, %s59
      %p73 = scmp.eq.s32.totalorder %s25, 1
      %p74 = por %p72, %p73
      %p76 = scmp.ne.s32.totalorder %s59, %s75
      %p77 = scmp.eq.s32.totalorder %s25, 0
      %p78 = por %p76, %p77
      %s80 = sadd.s32 %s79, 1
      %p83 = scmp.eq.s32.totalorder %s19, 1
      %p84 = scmp.ne.s32.totalorder %s79, %s81
      %p85 = scmp.eq.s32.totalorder %s19, 0
      %p86 = por %p84, %p85
      %p87 = scmp.ne.s32.totalorder %s79, %s81
      %p88 = scmp.eq.s32.totalorder %s24, 1
      %p89 = por %p87, %p88
      %p90 = scmp.ne.s32.totalorder %s81, %s82
      %p91 = scmp.eq.s32.totalorder %s24, 0
      %p92 = por %p90, %p91
      %p93 = scmp.ne.s32.totalorder %s81, %s82
      %p94 = scmp.eq.s32.totalorder %s25, 1
      %p95 = por %p93, %p94
      %p97 = scmp.ne.s32.totalorder %s82, %s96
      %p98 = scmp.eq.s32.totalorder %s25, 0
      %p99 = por %p97, %p98
      %s101 = sadd.s32 %s100, 1
      %p104 = scmp.eq.s32.totalorder %s19, 1
      %p105 = scmp.ne.s32.totalorder %s100, %s102
      %p106 = scmp.eq.s32.totalorder %s19, 0
      %p107 = por %p105, %p106
      %p108 = scmp.ne.s32.totalorder %s100, %s102
      %p109 = scmp.eq.s32.totalorder %s24, 1
      %p110 = por %p108, %p109
      %p111 = scmp.ne.s32.totalorder %s102, %s103
      %p112 = scmp.eq.s32.totalorder %s24, 0
      %p113 = por %p111, %p112
      %p114 = scmp.ne.s32.totalorder %s102, %s103
      %p115 = scmp.eq.s32.totalorder %s25, 1
      %p116 = por %p114, %p115
      %p118 = scmp.ne.s32.totalorder %s103, %s117
      %p119 = scmp.eq.s32.totalorder %s25, 0
      %p120 = por %p118, %p119
      %s121 = ssub.s32 %s19, %s26
      %p122 = scmp.eq.s32.totalorder %s121, 0
      %s124 = sadd.s32 %s123, 1
      %s125 = scalar_select %p122, %s123, %s124
      %p128 = pneg %p122
      %p129 = scmp.eq.s32.totalorder %s19, 1
      %p130 = por %p128, %p129
      %p131 = scmp.ne.s32.totalorder %s123, %s126
      %p132 = scmp.eq.s32.totalorder %s19, 0
      %p133 = por %p131, %p132
      %p134 = scmp.ne.s32.totalorder %s123, %s126
      %p135 = scmp.eq.s32.totalorder %s24, 1
      %p136 = por %p134, %p135
      %p137 = scmp.ne.s32.totalorder %s126, %s127
      %p138 = scmp.eq.s32.totalorder %s24, 0
      %p139 = por %p137, %p138
      %p140 = scmp.ne.s32.totalorder %s126, %s127
      %p141 = scmp.eq.s32.totalorder %s25, 1
      %p142 = por %p140, %p141
      %p144 = scmp.ne.s32.totalorder %s127, %s143
      %p145 = scmp.eq.s32.totalorder %s25, 0
      %p146 = por %p144, %p145
      %p147 = scmp.le.s32.totalorder 1, %s19
      %p148 = scmp.lt.s32.totalorder %s19, 3
      %p149 = pnand %p147, %p148
      %p150 = pneg %p149
      // Predicated region
      $region9: #{tpu_custom_call.1} parent=5 // pred_check
        _
      $region10: #{tpu_custom_call.1} parent=5 // pred_check_branch
        %152 = sbr.rel (%p149) target = $region12
      $region11: #{tpu_custom_call.1} parent=5 // pred_region
        %s153 = ssub.s32 %s19, 1
        // Predicated region
        $region13: #{tpu_custom_call.1} parent=11 // pred_check
          %p154 = pneg %p92
        $region14: #{tpu_custom_call.1} parent=11 // pred_check_branch
          %156 = sbr.rel (%p154) target = $region16
        $region15: #{tpu_custom_call.1} parent=11 // pred_region
          %s158 = ssub.s32 64, 64
          %159 = vsyncadd [#allocation6], %s158
          %s161 = sshll.u32 [#allocation7], 4
          %s162 = int_to_ptr.vmem [resolvable:$true] %s161
          %164 = dma.hbm_to_vmem [thread:$0]  %s2, 64, %s162, [#allocation6]
        $region16: #{tpu_custom_call.1} parent=11 // pred_fallthru
          _
        // Predicated region
        $region17: #{tpu_custom_call.1} parent=11 // pred_check
          %p165 = pneg %p113
        $region18: #{tpu_custom_call.1} parent=11 // pred_check_branch
          %167 = sbr.rel (%p165) target = $region20
        $region19: #{tpu_custom_call.1} parent=11 // pred_region
          _
        $region20: #{tpu_custom_call.1} parent=11 // pred_fallthru
          _
      $region12: #{tpu_custom_call.1} parent=5 // pred_fallthru
        _
      %p168 = scmp.lt.s32.totalorder %s19, 2
      // Predicated region
      $region21: #{tpu_custom_call.1} parent=5 // pred_check
        %p169 = pneg %p168
      $region22: #{tpu_custom_call.1} parent=5 // pred_check_branch
        %171 = sbr.rel (%p169) target = $region24
      $region23: #{tpu_custom_call.1} parent=5 // pred_region
        // Predicated region
        $region25: #{tpu_custom_call.1} parent=23 // pred_check
          %p172 = pneg %p39
        $region26: #{tpu_custom_call.1} parent=23 // pred_check_branch
          %174 = sbr.rel (%p172) target = $region28
        $region27: #{tpu_custom_call.1} parent=23 // pred_region
          %s175 = sand.u32 %s29, 1
          %s176 = scalar_lea.sflag [#allocation3], %s175
          %s177 = sand.u32 %s29, 1
          %s178 = smul.addr %s177, 8
          %s179 = scalar_lea.vmem [#allocation2], %s178
          %s181 = ssub.s32 128, 128
          %182 = vsyncadd %s176, %s181
          %s183 = smul.addr %s19, 2
          %s184 = smul.addr %s183, 64
          %s185 = scalar_lea.hbm %s0, %s184
          %s187 = sshll.u32 %s179, 4
          %s188 = int_to_ptr.vmem [resolvable:$true] %s187
          %190 = dma.hbm_to_vmem [thread:$0]  %s185, 128, %s188, %s176
        $region28: #{tpu_custom_call.1} parent=23 // pred_fallthru
          _
        // Predicated region
        $region29: #{tpu_custom_call.1} parent=23 // pred_check
          %p191 = pneg %p65
        $region30: #{tpu_custom_call.1} parent=23 // pred_check_branch
          %193 = sbr.rel (%p191) target = $region32
        $region31: #{tpu_custom_call.1} parent=23 // pred_region
          %s194 = sand.u32 %s19, 1
          %s195 = scalar_lea.sflag [#allocation6], %s194
          %s196 = sand.u32 %s55, 1
          %s197 = smul.addr %s196, 8
          %s198 = scalar_lea.vmem [#allocation5], %s197
          %s200 = ssub.s32 128, 128
          %201 = vsyncadd %s195, %s200
          %s202 = smul.addr %s19, 2
          %s203 = smul.addr %s202, 64
          %s204 = scalar_lea.hbm %s1, %s203
          %s206 = sshll.u32 %s198, 4
          %s207 = int_to_ptr.vmem [resolvable:$true] %s206
          %209 = dma.hbm_to_vmem [thread:$0]  %s204, 128, %s207, %s195
        $region32: #{tpu_custom_call.1} parent=23 // pred_fallthru
          _
      $region24: #{tpu_custom_call.1} parent=5 // pred_fallthru
        _
      %p210 = scmp.le.s32.totalorder 1, %s19
      %p211 = scmp.lt.s32.totalorder %s19, 3
      %p212 = pnand %p210, %p211
      %p213 = pneg %p212
      // Predicated region
      $region33: #{tpu_custom_call.1} parent=5 // pred_check
        _
      $region34: #{tpu_custom_call.1} parent=5 // pred_check_branch
        %215 = sbr.rel (%p212) target = $region36
      $region35: #{tpu_custom_call.1} parent=5 // pred_region
        %s216 = ssub.s32 %s19, 1
        %s217 = sand.u32 %s32, 1
        %s218 = scalar_lea.sflag [#allocation3], %s217
        %s219 = sand.u32 %s32, 1
        %s220 = smul.addr %s219, 8
        %s221 = scalar_lea.vmem [#allocation2], %s220
        // Predicated region
        $region37: #{tpu_custom_call.1} parent=35 // pred_check
          %p222 = pneg %p45
        $region38: #{tpu_custom_call.1} parent=35 // pred_check_branch
          %224 = sbr.rel (%p222) target = $region40
        $region39: #{tpu_custom_call.1} parent=35 // pred_region
          %225 = dma.done %s218, 128
        $region40: #{tpu_custom_call.1} parent=35 // pred_fallthru
          _
        %s226 = sand.u32 %s24, 1
        %s227 = scalar_lea.sflag [#allocation6], %s226
        %s228 = sand.u32 %s58, 1
        %s229 = smul.addr %s228, 8
        %s230 = scalar_lea.vmem [#allocation5], %s229
        // Predicated region
        $region41: #{tpu_custom_call.1} parent=35 // pred_check
          %p231 = pneg %p71
        $region42: #{tpu_custom_call.1} parent=35 // pred_check_branch
          %233 = sbr.rel (%p231) target = $region44
        $region43: #{tpu_custom_call.1} parent=35 // pred_region
          %234 = dma.done %s227, 128
        $region44: #{tpu_custom_call.1} parent=35 // pred_fallthru
          _
        // Predicated region
        $region45: #{tpu_custom_call.1} parent=35 // pred_check
          %p235 = pneg %p92
        $region46: #{tpu_custom_call.1} parent=35 // pred_check_branch
          %237 = sbr.rel (%p235) target = $region48
        $region47: #{tpu_custom_call.1} parent=35 // pred_region
          %238 = dma.done [#allocation6], 64
        $region48: #{tpu_custom_call.1} parent=35 // pred_fallthru
          _
        %s239 = sand.u32 %s32, 1
        %s240 = scalar_lea.sflag [#allocation3], %s239
        %s241 = sand.u32 %s32, 1
        %s242 = smul.addr %s241, 8
        %s243 = scalar_lea.vmem [#allocation2], %s242
        %p244 = pneg %p45
        %p245 = pneg %p42
        %s246 = sand.u32 %s24, 1
        %s247 = scalar_lea.sflag [#allocation6], %s246
        %s248 = sand.u32 %s58, 1
        %s249 = smul.addr %s248, 8
        %s250 = scalar_lea.vmem [#allocation5], %s249
        %p251 = pneg %p71
        %p252 = pneg %p68
        %p253 = pneg %p92
        %p254 = pneg %p89
        %p255 = pneg %p113
        %p256 = pneg %p110
        %p257 = pneg %p139
        %p258 = pneg %p136
        %s259 = sand.u32 %s126, 1
        %s260 = scalar_lea.sflag [#allocation4], %s259
        %s261 = sand.u32 %s126, 1
        %s262 = smul.addr %s261, 8
        %s263 = scalar_lea.vmem [#allocation8], %s262
        %v264 = vld [vmem:[%s221] sm:$0xff]
        %v265 = vld [vmem:[%s230] sm:$0xff]
        %v267 = vcombine.high %v264, %v264
        %vm269 = vcmask 1043456
        %v270 = vsel %vm269, %v264, 0.0
        %v271 = vsel %vm269, %v267, 0.0
        %v272 = vadd.f32 %v270, %v271
        %273 = vadd.xlane.f32.xlu0 %v272
        %v274 = vpop.xlane.xlu0 %273
        %v276 = vcombine.high %v265, %v265
        %v278 = vsel %vm269, %v265, 0.0
        %v279 = vsel %vm269, %v276, 0.0
        %v280 = vadd.f32 %v278, %v279
        %281 = vadd.xlane.f32.xlu0 %v280
        %v282 = vpop.xlane.xlu0 %281
        %v283 = vadd.f32 %v274, %v282
        %v284 = vmul.f32 %v283, 0.00390625
        %v285 = vld [vmem:[#allocation7] sm:$0xf]
        %v286 = vmul.f32 %v285, %v284
        %vm287 = vcmask 27648
        %v288 = vsel %vm287, %v286, 0.0
        %v289 = vrot.slane %v288, 4
        %v290 = vadd.f32 %v288, %v289
        %v291 = vrot.slane %v290, 2
        %v292 = vadd.f32 %v290, %v291
        %v293 = vrot.slane %v292, 1
        %v294 = vadd.f32 %v292, %v293
        %v295 = vmax.f32 %v294, 0.0
        %v296 = vld [vmem:[%s3] sm:$0xf]
        %v297 = vmul.f32 %v296, %v295
        %v298 = vsel %vm287, %v297, 0.0
        %299 = vadd.xlane.f32.xlu0 %v298
        %v300 = vpop.xlane.xlu0 %299
        %v301 = vxor.u32 %v300, 2147483648
        %v302 = vmul.f32 %v301, 1.442695
        %v303 = vpow.pop %v302
        %v304 = vadd.f32 %v303, 1.0
        %v305 = vrcp.pop %v304
        %v306 = vmul.f32 1.0, %v305
        %v307 = vadd.f32 %v264, %v265
        %v308 = vadd.f32 %v306, 1.0
        %v311 = vunpack.c.l.s4 839922192
        %v312 = vunpack.c.0.s8 %v311
        %v313 = vlaneseq
        %v314 = vshrl.u32 %v313, 7
        %v315 = vsub.s32 %v312, %v314
        %v316 = vrot.slane %v308, %v315
        %v318 = vmul.f32 %v307, %v316
        %319 = vst [vmem:[%s263] sm:$0xff] %v318
        %s320 = sand.u32 %s126, 1
        %s321 = scalar_lea.sflag [#allocation4], %s320
        %s322 = sand.u32 %s126, 1
        %s323 = smul.addr %s322, 8
        %s324 = scalar_lea.vmem [#allocation8], %s323
        // Predicated region
        $region49: #{tpu_custom_call.1} parent=35 // pred_check
          %p325 = pneg %p136
        $region50: #{tpu_custom_call.1} parent=35 // pred_check_branch
          %327 = sbr.rel (%p325) target = $region52
        $region51: #{tpu_custom_call.1} parent=35 // pred_region
          %s329 = ssub.s32 128, 128
          %330 = vsyncadd %s321, %s329
          %s331 = smul.addr %s24, 2
          %s332 = smul.addr %s331, 64
          %s333 = scalar_lea.hbm %s4, %s332
          %s335 = sshll.u32 %s324, 4
          %s336 = int_to_ptr.vmem [resolvable:$true] %s335
          %338 = dma.vmem_to_hbm [thread:$0]  %s336, 128, %s333, %s321
        $region52: #{tpu_custom_call.1} parent=35 // pred_fallthru
          _
      $region36: #{tpu_custom_call.1} parent=5 // pred_fallthru
        _
      %p339 = scmp.le.s32.totalorder 2, %s19
      // Predicated region
      $region53: #{tpu_custom_call.1} parent=5 // pred_check
        %p340 = pneg %p339
      $region54: #{tpu_custom_call.1} parent=5 // pred_check_branch
        %342 = sbr.rel (%p340) target = $region56
      $region55: #{tpu_custom_call.1} parent=5 // pred_region
        %s343 = ssub.s32 %s19, 2
        // Predicated region
        $region57: #{tpu_custom_call.1} parent=55 // pred_check
          %p344 = pneg %p142
        $region58: #{tpu_custom_call.1} parent=55 // pred_check_branch
          %346 = sbr.rel (%p344) target = $region60
        $region59: #{tpu_custom_call.1} parent=55 // pred_region
          %s347 = sand.u32 %s127, 1
          %s348 = scalar_lea.sflag [#allocation4], %s347
          %s349 = sand.u32 %s127, 1
          %s350 = smul.addr %s349, 8
          %s351 = scalar_lea.vmem [#allocation8], %s350
          %352 = dma.done %s348, 128
        $region60: #{tpu_custom_call.1} parent=55 // pred_fallthru
          _
      $region56: #{tpu_custom_call.1} parent=5 // pred_fallthru
        _
    $region6: #{tpu_custom_call.1} parent=1 // loop_footer
      %s23 = sadd.s32 1, %s19
    $region7: #{tpu_custom_call.1} parent=1 // loop_footer_branch
      %18 = sbr.rel target = $region3
    $region8: #{tpu_custom_call.1} parent=1 // loop_exit
      _
    %353 = vsyncpa [#allocation3], 1
    %s354 = scalar_lea.sflag [#allocation3], 1
    %355 = vsyncpa %s354, 1
    %356 = vsyncpa [#allocation6], 1
    %s357 = scalar_lea.sflag [#allocation6], 1
    %358 = vsyncpa %s357, 1
    %359 = vsyncpa [#allocation4], 1
    %s360 = scalar_lea.sflag [#allocation4], 1
    %361 = vsyncpa %s360, 1

</llo_original>
